<compile_context>
chip_gen: v7x
topology: tpu7x:2x2x1
jax: 0.10.0
libtpu: 0.0.40
codegen_flags: <defaults>
</compile_context>

<pallas_src>
import functools

import jax
import jax.numpy as jnp
from jax import lax
from jax.experimental import pallas as pl
from jax.experimental.pallas import tpu as pltpu

_LANES = 128
_TARGET_BLOCK_BYTES = 4 << 20          # ~4 MiB VMEM footprint per input block
_MIN_PALLAS_ELEMENTS = 256 * 1024      # below ~1 MiB f32 fused XLA wins
_MAX_DIRECT_LAST_DIM = 32768           # widest last dim we tile directly


def _cdiv(a, b):
    return -(-a // b)


def _round_up(x, m):
    return _cdiv(x, m) * m


# ---------------------------------------------------------------------------
# Kernels
# ---------------------------------------------------------------------------
def _l2_partial_sum_kernel(pred_ref, targ_ref, partial_ref, *,
                           block_rows, total_rows, mask_tail):
    """take_mean=True: per-block partial sum of (pred - targ)^2.

    Writes a (1, 8, lanes) f32 partial (sublane-folded, mostly VPU adds);
    the tiny cross-lane reduction + weight/N scaling happens in the wrapper.
    """
    d = pred_ref[...].astype(jnp.float32) - targ_ref[...].astype(jnp.float32)
    sq = d * d
    if mask_tail:
        # Last grid block overhangs the array: rows >= total_rows hold
        # unspecified data -> zero them before reducing.
        row = (pl.program_id(0) * block_rows
               + lax.broadcasted_iota(jnp.int32, sq.shape, 0))
        sq = jnp.where(row < total_rows, sq, 0.0)
    lanes = sq.shape[1]
    partial_ref[...] = sq.reshape(block_rows // 8, 8, lanes).sum(axis=0)[None]


def _l2_weighted_elem_kernel(pred_ref, targ_ref, w_ref, out_ref):
    """take_mean=False: out = (pred - targ)^2 * w, elementwise."""
    d = pred_ref[...].astype(jnp.float32) - targ_ref[...].astype(jnp.float32)
    out_ref[...] = (d * d * w_ref[0]).astype(out_ref.dtype)


# ---------------------------------------------------------------------------
# Wrapper
# ---------------------------------------------------------------------------
def weighted_loss(pred, targ, weights=1.0, take_mean=True, *,
                  block_rows=None, min_pallas_elements=_MIN_PALLAS_ELEMENTS):
    """Pallas implementation of WeightedLoss.forward (L2 subclass).

    pred, targ: arrays of identical shape (e.g. [batch, action_dim]).
    weights:    scalar (like torch.tensor(1.0)); broadcastable arrays are
                handled exactly via the fused-XLA fallback.
    """
    pred = jnp.asarray(pred)
    targ = jnp.asarray(targ)
    if pred.shape != targ.shape:
        raise ValueError(f"shape mismatch: {pred.shape} vs {targ.shape}")
    w = lax.stop_gradient(jnp.asarray(weights, dtype=jnp.float32))  # .detach()
    out_dtype = jnp.result_type(pred.dtype, targ.dtype)
    n = pred.size

    def _xla_path():
        # Fused XLA: exact module semantics, used for tiny inputs,
        # broadcastable (non-scalar) weights and exotic shapes.
        loss = (pred.astype(jnp.float32) - targ.astype(jnp.float32)) ** 2
        wl = loss * w
        return wl.mean() if take_mean else wl.astype(out_dtype)

    if w.size != 1 or n < max(1, int(min_pallas_elements)):
        return _xla_path()
    w = w.reshape(())

    # ---- copy-free 2-D view: collapse leading dims, keep the last dim ----
    if pred.ndim >= 2:
        lanes = int(pred.shape[-1])
        rows = n // lanes
    elif n % _LANES == 0:
        lanes = _LANES
        rows = n // _LANES
    else:
        # TODO(synk): 1-D, non-128-multiple inputs would need a pad copy.
        return _xla_path()
    if rows < 8 or lanes < 1 or lanes > _MAX_DIRECT_LAST_DIM:
        return _xla_path()

    pred2 = pred.reshape(rows, lanes)   # last dim preserved -> no relayout
    targ2 = targ.reshape(rows, lanes)

    # ---- block sizing: ~4 MiB of VMEM footprint per input block ----
    lanes_padded = _round_up(lanes, _LANES)
    isz_in = max(pred.dtype.itemsize, targ.dtype.itemsize)
    if block_rows is None:
        block_rows = _TARGET_BLOCK_BYTES // (lanes_padded * isz_in)
    br = max(8, _round_up(int(block_rows), 8))
    br = min(br, _round_up(rows, 8))
    num_blocks = _cdiv(rows, br)
    mask_tail = (rows % br) != 0

    # ---- explicit scoped-VMEM budget (covers v5e's 16 MiB default) ----
    in_vmem = 2 * br * lanes_padded * (pred.dtype.itemsize + targ.dtype.itemsize)
    if take_mean:
        out_vmem = 2 * 8 * lanes_padded * 4
    else:
        out_vmem = 2 * br * lanes_padded * jnp.dtype(out_dtype).itemsize
    vmem_limit = min(max(int((in_vmem + out_vmem) * 1.5) + (2 << 20), 16 << 20),
                     56 << 20)

    tile = pl.BlockSpec((br, lanes), lambda i: (i, 0))
    cparams = pltpu.CompilerParams(
        dimension_semantics=("parallel",),   # independent blocks on all paths
        vmem_limit_bytes=vmem_limit)

    if take_mean:
        kernel = functools.partial(_l2_partial_sum_kernel,
                                   block_rows=br, total_rows=rows,
                                   mask_tail=mask_tail)
        partials = pl.pallas_call(
            kernel,
            out_shape=jax.ShapeDtypeStruct((num_blocks, 8, lanes), jnp.float32),
            grid=(num_blocks,),
            in_specs=[tile, tile],
            out_specs=pl.BlockSpec((1, 8, lanes), lambda i: (i, 0, 0)),
            compiler_params=cparams,
        )(pred2, targ2)
        # Tiny final reduction; weight and global element count folded here.
        return jnp.sum(partials) * (w / jnp.float32(n))
    else:
        out = pl.pallas_call(
            _l2_weighted_elem_kernel,
            out_shape=jax.ShapeDtypeStruct((rows, lanes), out_dtype),
            grid=(num_blocks,),
            in_specs=[tile, tile,
                      pl.BlockSpec((1,), lambda i: (0,),
                                   memory_space=pltpu.MemorySpace.SMEM)],
            out_specs=tile,
            compiler_params=cparams,
        )(pred2, targ2, w.reshape((1,)))
        return out.reshape(pred.shape)   # leading dims only -> free


# ---------------------------------------------------------------------------
# Main
# ---------------------------------------------------------------------------
if __name__ == "__main__":
    key = jax.random.PRNGKey(0)
    k1, k2, k3, k4, k5, k6 = jax.random.split(key, 6)

    # Case 1: Pallas path, single block, 2-D [batch, action_dim].
    pred = jax.random.normal(k1, (64, 32), dtype=jnp.float32)
    targ = jax.random.normal(k2, (64, 32), dtype=jnp.float32)
    w = 2.5
    ref = (pred - targ) ** 2 * w
    out_m = jax.block_until_ready(
        weighted_loss(pred, targ, w, take_mean=True, min_pallas_elements=0))
    out_e = jax.block_until_ready(
        weighted_loss(pred, targ, w, take_mean=False, min_pallas_elements=0))
    assert jnp.allclose(out_m, ref.mean(), rtol=1e-5, atol=1e-6), (out_m, ref.mean())
    assert jnp.allclose(out_e, ref, rtol=1e-5, atol=1e-6)

    # Case 2: multi-block + ragged last block + non-128 last dim (tail masking).
    pred2 = jax.random.normal(k3, (72, 50), dtype=jnp.float32)
    targ2 = jax.random.normal(k4, (72, 50), dtype=jnp.float32)
    ref2 = (pred2 - targ2) ** 2
    out_m2 = jax.block_until_ready(
        weighted_loss(pred2, targ2, 1.0, take_mean=True,
                      block_rows=16, min_pallas_elements=0))
    out_e2 = jax.block_until_ready(
        weighted_loss(pred2, targ2, 1.0, take_mean=False,
                      block_rows=16, min_pallas_elements=0))
    assert jnp.allclose(out_m2, ref2.mean(), rtol=1e-5, atol=1e-6), (out_m2, ref2.mean())
    assert jnp.allclose(out_e2, ref2, rtol=1e-5, atol=1e-6)

    # Case 3: lane-dense last dim (128), multi-block ragged grid.
    pred3 = jax.random.normal(k5, (40, 128), dtype=jnp.float32)
    targ3 = jax.random.normal(k6, (40, 128), dtype=jnp.float32)
    ref3 = (pred3 - targ3) ** 2 * w
    out_m3 = jax.block_until_ready(
        weighted_loss(pred3, targ3, w, take_mean=True,
                      block_rows=16, min_pallas_elements=0))
    out_e3 = jax.block_until_ready(
        weighted_loss(pred3, targ3, w, take_mean=False,
                      block_rows=16, min_pallas_elements=0))
    assert jnp.allclose(out_m3, ref3.mean(), rtol=1e-5, atol=1e-6)
    assert jnp.allclose(out_e3, ref3, rtol=1e-5, atol=1e-6)

    # Case 4: bf16 inputs -> bf16 elementwise output, f32 mean.
    pred4 = pred.astype(jnp.bfloat16)
    targ4 = targ.astype(jnp.bfloat16)
    ref4 = (pred4.astype(jnp.float32) - targ4.astype(jnp.float32)) ** 2
    out_e4 = jax.block_until_ready(
        weighted_loss(pred4, targ4, 1.0, take_mean=False, min_pallas_elements=0))
    out_m4 = jax.block_until_ready(
        weighted_loss(pred4, targ4, 1.0, take_mean=True, min_pallas_elements=0))
    assert out_e4.dtype == jnp.bfloat16
    assert jnp.allclose(out_e4.astype(jnp.float32), ref4, rtol=2e-2, atol=2e-2)
    assert jnp.allclose(out_m4, ref4.mean(), rtol=2e-2, atol=2e-2)

    # Case 5: 4-D input, collapsed leading dims (2, 4, 16, 16).
    pred5 = jax.random.normal(k1, (2, 4, 16, 16), dtype=jnp.float32)
    targ5 = jax.random.normal(k2, (2, 4, 16, 16), dtype=jnp.float32)
    ref5 = (pred5 - targ5) ** 2
    out_m5 = jax.block_until_ready(
        weighted_loss(pred5, targ5, 1.0, take_mean=True, min_pallas_elements=0))
    out_e5 = jax.block_until_ready(
        weighted_loss(pred5, targ5, 1.0, take_mean=False, min_pallas_elements=0))
    assert jnp.allclose(out_m5, ref5.mean(), rtol=1e-5, atol=1e-6)
    assert jnp.allclose(out_e5, ref5, rtol=1e-5, atol=1e-6)
    assert out_e5.shape == pred5.shape

    # Case 6: tiny input (default threshold) and non-scalar weights -> XLA fallback.
    pred6, targ6 = pred[:8, :], targ[:8, :]
    out_m6 = jax.block_until_ready(weighted_loss(pred6, targ6, w, take_mean=True))
    assert jnp.allclose(out_m6, ((pred6 - targ6) ** 2 * w).mean(), rtol=1e-5, atol=1e-6)
    w_vec = jnp.linspace(0.5, 1.5, 64).reshape(64, 1)
    out_m7 = jax.block_until_ready(weighted_loss(pred, targ, w_vec, take_mean=True))
    assert jnp.allclose(out_m7, ((pred - targ) ** 2 * w_vec).mean(), rtol=1e-5, atol=1e-6)

    print("KERNEL_OK")
</pallas_src>

<mosaic_0001>
module attributes {stable_mosaic.version = 11 : i64} {
  func.func @_l2_partial_sum_kernel(%arg0: i32, %arg1: memref<64x32xf32, #tpu.memory_space<vmem>>, %arg2: memref<64x32xf32, #tpu.memory_space<vmem>>, %arg3: memref<1x8x32xf32, #tpu.memory_space<vmem>>) attributes {dimension_semantics = [#tpu.dimension_semantics<parallel>], iteration_bounds = array<i64: 1>, scalar_prefetch = 0 : i64, scratch_operands = 0 : i64, tpu.core_type = #tpu.core_type<tc>, window_params = [{transform_indices = @transform_0, window_bounds = array<i64: 64, 32>}, {transform_indices = @transform_1, window_bounds = array<i64: 64, 32>}, {transform_indices = @transform_2, window_bounds = array<i64: 1, 8, 32>}]} {
    %c0 = arith.constant 0 : index
    %c0_0 = arith.constant 0 : index
    %0 = vector.load %arg1[%c0, %c0_0] : memref<64x32xf32, #tpu.memory_space<vmem>>, vector<64x32xf32>
    %c0_1 = arith.constant 0 : index
    %c0_2 = arith.constant 0 : index
    %1 = vector.load %arg2[%c0_1, %c0_2] : memref<64x32xf32, #tpu.memory_space<vmem>>, vector<64x32xf32>
    %2 = arith.subf %0, %1 : vector<64x32xf32>
    %3 = arith.mulf %2, %2 : vector<64x32xf32>
    %4 = vector.shape_cast %3 : vector<64x32xf32> to vector<8x8x32xf32>
    %cst = arith.constant dense<0.000000e+00> : vector<8x32xf32>
    %5 = vector.multi_reduction <add>, %4, %cst [0] : vector<8x8x32xf32> to vector<8x32xf32>
    %6 = vector.shape_cast %5 : vector<8x32xf32> to vector<1x8x32xf32>
    %c0_3 = arith.constant 0 : index
    %c0_4 = arith.constant 0 : index
    %c0_5 = arith.constant 0 : index
    %7 = vector.load %arg3[%c0_3, %c0_4, %c0_5] : memref<1x8x32xf32, #tpu.memory_space<vmem>>, vector<1x8x32xf32>
    tpu.vector_store %arg3[%c0_3, %c0_4, %c0_5], %6 {strides = array<i32>} : memref<1x8x32xf32, #tpu.memory_space<vmem>>, vector<1x8x32xf32>,
    return
  }
  func.func @transform_0(%arg0: i32) -> (i32, i32) {
    %c0_i32 = arith.constant 0 : i32
    %c0_i32_0 = arith.constant 0 : i32
    return %arg0, %c0_i32 : i32, i32
  }
  func.func @transform_1(%arg0: i32) -> (i32, i32) {
    %c0_i32 = arith.constant 0 : i32
    %c0_i32_0 = arith.constant 0 : i32
    return %arg0, %c0_i32 : i32, i32
  }
  func.func @transform_2(%arg0: i32) -> (i32, i32, i32) {
    %c0_i32 = arith.constant 0 : i32
    %c0_i32_0 = arith.constant 0 : i32
    %c0_i32_1 = arith.constant 0 : i32
    return %arg0, %c0_i32, %c0_i32_0 : i32, i32, i32
  }
}

</mosaic_0001>

<llo_original>
// kernel: tpu_custom_call.1
$region0: #{tpu_custom_call.1}
  #allocation0 [shape = 'u32[]', space=smem, size = 0x4, offset = 0x4, fixed_abs, tag = 'smem constant byte address 0x4 - core index']
  #allocation1 [shape = 'u32[144,128]{1,0:T(1,128)}', space=vmem, size = 0x12000, scoped, tag = 'internal scratch']
  %s0 = inlined_call_operand.vmem [shape: f32[64,32], index: 0, kind: input, shape index: {}]
  %s1 = inlined_call_operand.vmem [shape: f32[64,32], index: 1, kind: input, shape index: {}]
  %s2 = inlined_call_operand.hbm [shape: f32[1,8,32], index: 2, kind: output, shape index: {}]
  %s3 = sld [smem:[#allocation0]]
  $region18: #{tpu_custom_call.1} parent=0
    _
  %s5 = ssub.s32 1, %s3
  %s6 = scalar_select 0, %s5, %s3
  $region1: #{tpu_custom_call.1} parent=0
    #allocation2 [shape = 'u8[4096]{0}', space=vmem, size = 0x1000, scoped, tag = 'output window, operand 0, single buffered']
    #allocation3 [shape = 's32[1]{0}', space=sflag, size = 0x4, scoped, tag = 'scoped memory for tpu_custom_call.1']
    %7 = vsyncpa [#allocation3], 0
    // Predicated region
    $region2: #{tpu_custom_call.1} parent=1 // pred_check
      _
    $region3: #{tpu_custom_call.1} parent=1 // pred_check_branch
      %9 = sbr.rel (0) target = $region5
    $region4: #{tpu_custom_call.1} parent=1 // pred_region
      _
    $region5: #{tpu_custom_call.1} parent=1 // pred_fallthru
      _
    // Predicated region
    $region6: #{tpu_custom_call.1} parent=1 // pred_check
      _
    $region7: #{tpu_custom_call.1} parent=1 // pred_check_branch
      %11 = sbr.rel (0) target = $region9
    $region8: #{tpu_custom_call.1} parent=1 // pred_region
      _
    $region9: #{tpu_custom_call.1} parent=1 // pred_fallthru
      _
    %v12 = vld [vmem:[%s0] sm:$0xff]
    %v13 = vld [vmem:[%s0 + $0x8] sm:$0xff]
    %v14 = vld [vmem:[%s0 + $0x10] sm:$0xff]
    %v15 = vld [vmem:[%s0 + $0x18] sm:$0xff]
    %v16 = vld [vmem:[%s0 + $0x20] sm:$0xff]
    %v17 = vld [vmem:[%s0 + $0x28] sm:$0xff]
    %v18 = vld [vmem:[%s0 + $0x30] sm:$0xff]
    %v19 = vld [vmem:[%s0 + $0x38] sm:$0xff]
    %v20 = vld [vmem:[%s1] sm:$0xff]
    %v21 = vld [vmem:[%s1 + $0x8] sm:$0xff]
    %v22 = vld [vmem:[%s1 + $0x10] sm:$0xff]
    %v23 = vld [vmem:[%s1 + $0x18] sm:$0xff]
    %v24 = vld [vmem:[%s1 + $0x20] sm:$0xff]
    %v25 = vld [vmem:[%s1 + $0x28] sm:$0xff]
    %v26 = vld [vmem:[%s1 + $0x30] sm:$0xff]
    %v27 = vld [vmem:[%s1 + $0x38] sm:$0xff]
    %v28 = vsub.f32 %v12, %v20
    %v29 = vsub.f32 %v13, %v21
    %v30 = vsub.f32 %v14, %v22
    %v31 = vsub.f32 %v15, %v23
    %v32 = vsub.f32 %v16, %v24
    %v33 = vsub.f32 %v17, %v25
    %v34 = vsub.f32 %v18, %v26
    %v35 = vsub.f32 %v19, %v27
    %v36 = vmul.f32 %v28, %v28
    %v37 = vmul.f32 %v29, %v29
    %v38 = vmul.f32 %v30, %v30
    %v39 = vmul.f32 %v31, %v31
    %v40 = vmul.f32 %v32, %v32
    %v41 = vmul.f32 %v33, %v33
    %v42 = vmul.f32 %v34, %v34
    %v43 = vmul.f32 %v35, %v35
    %vm44 = vcmask 261120
    %v45 = vsel %vm44, %v36, 0.0
    %v46 = vsel %vm44, %v37, 0.0
    %v47 = vadd.f32 %v45, %v46
    %v48 = vsel %vm44, %v38, 0.0
    %v49 = vadd.f32 %v47, %v48
    %v50 = vsel %vm44, %v39, 0.0
    %v51 = vadd.f32 %v49, %v50
    %v52 = vsel %vm44, %v40, 0.0
    %v53 = vadd.f32 %v51, %v52
    %v54 = vsel %vm44, %v41, 0.0
    %v55 = vadd.f32 %v53, %v54
    %v56 = vsel %vm44, %v42, 0.0
    %v57 = vadd.f32 %v55, %v56
    %v58 = vsel %vm44, %v43, 0.0
    %v59 = vadd.f32 %v57, %v58
    %60 = vst.msk [vmem:[#allocation2] sm:$0xff] %vm44, %v59
    // Predicated region
    $region10: #{tpu_custom_call.1} parent=1 // pred_check
      _
    $region11: #{tpu_custom_call.1} parent=1 // pred_check_branch
      %62 = sbr.rel (0) target = $region13
    $region12: #{tpu_custom_call.1} parent=1 // pred_region
      %s64 = ssub.s32 128, 128
      %65 = vsyncadd [#allocation3], %s64
      %s67 = sshll.u32 [#allocation2], 4
      %s68 = int_to_ptr.vmem [resolvable:$true] %s67
      %70 = dma.vmem_to_hbm [thread:$0]  %s68, 128, %s2, [#allocation3]
    $region13: #{tpu_custom_call.1} parent=1 // pred_fallthru
      _
    // Predicated region
    $region14: #{tpu_custom_call.1} parent=1 // pred_check
      _
    $region15: #{tpu_custom_call.1} parent=1 // pred_check_branch
      %72 = sbr.rel (0) target = $region17
    $region16: #{tpu_custom_call.1} parent=1 // pred_region
      %73 = dma.done [#allocation3], 128
    $region17: #{tpu_custom_call.1} parent=1 // pred_fallthru
      _
    %74 = vsyncpa [#allocation3], 1

</llo_original>
